<compile_context>
chip_gen: v7x
topology: tpu7x:2x2x1
jax: 0.10.0
libtpu: 0.0.40
codegen_flags: <defaults>
</compile_context>

<pallas_src>
import functools

import jax
import jax.numpy as jnp
from jax.experimental import pallas as pl
from jax.experimental.pallas import tpu as pltpu


def _sgu_kernel(res_ref, gate_ref, w_ref, bias_ref, gamma_ref, beta_ref,
                o_ref, gate_sc, *, heads, eps):
    """One (batch b, row-tile m) grid step.

    Block shapes:
      res_ref  : (1, TM, DIM_OUT)  input dtype   rows [m*TM, (m+1)*TM) of batch b
      gate_ref : (1, N,  DIM_OUT)  input dtype   whole sequence of batch b
      w_ref    : (H, TM, N)        bf16          row tile of the spatial weight
      bias_ref : (H, TM, 1)        f32
      gamma_ref, beta_ref : (1, DIM_OUT) f32     LayerNorm affine params
      o_ref    : (1, TM, DIM_OUT)
      gate_sc  : (N, DIM_OUT)      bf16 VMEM scratch, persistent across m-steps
    """
    m = pl.program_id(1)

    # LayerNorm over dim_out, computed once per batch (m == 0), single-pass stats.
    @pl.when(m == 0)
    def _():
        g = gate_ref[0].astype(jnp.float32)                        # (N, DIM_OUT)
        inv_d = 1.0 / g.shape[-1]
        mean = jnp.sum(g, axis=-1, keepdims=True) * inv_d
        mean_sq = jnp.sum(g * g, axis=-1, keepdims=True) * inv_d
        var = mean_sq - mean * mean
        g = (g - mean) * jax.lax.rsqrt(var + eps)
        g = g * gamma_ref[0][None, :] + beta_ref[0][None, :]
        gate_sc[...] = g.astype(gate_sc.dtype)                     # downcast for MXU only

    # Spatial gating for this row tile: out_h = W_h[m_rows, :] @ gate_h + bias_h.
    d_head = gate_sc.shape[-1] // heads
    res = res_ref[0]                                               # (TM, DIM_OUT), input dtype
    for h in range(heads):                                         # static loop; heads is small
        sl = slice(h * d_head, (h + 1) * d_head)
        g_h = gate_sc[:, sl]                                       # (N, d_head) bf16
        o_h = jnp.dot(w_ref[h], g_h,
                      preferred_element_type=jnp.float32)          # MXU, f32 accumulate
        o_h = o_h + bias_ref[h]                                    # (TM, 1) broadcast
        # Write each head straight into the output block (no concatenate copy).
        o_ref[0, :, sl] = (o_h * res[:, sl]).astype(o_ref.dtype)


def _pick_block_m(n, target=256):
    """Largest row tile <= target that divides n and is sublane-aligned for bf16."""
    if n <= target:
        return n
    for tm in range(target - target % 16, 15, -16):
        if n % tm == 0:
            return tm
    return n


def spatial_gating_unit(x, weight, bias, gamma, beta, *, heads=1, eps=1e-5,
                        block_m=None, mxu_dtype=jnp.bfloat16):
    """x: (B, N, DIM); weight: (H, N, N); bias: (H, N); gamma/beta: (DIM_OUT,)."""
    B, N, DIM = x.shape
    DIM_OUT = DIM // 2
    assert DIM % 2 == 0 and DIM_OUT % heads == 0

    if block_m is None:
        block_m = _pick_block_m(N)
    assert N % block_m == 0, "block_m must divide the sequence length"
    assert block_m == N or block_m % 16 == 0, "row tile must be sublane-aligned"
    m_tiles = N // block_m

    # Split in the wrapper so each half arrives lane-dense; res is never upcast.
    res = x[..., :DIM_OUT]
    gate = x[..., DIM_OUT:]

    w = weight.astype(mxu_dtype)                       # bf16 weights: half the VMEM, 3x MXU rate
    bias3 = bias.astype(jnp.float32).reshape(heads, N, 1)
    gamma2 = gamma.astype(jnp.float32).reshape(1, DIM_OUT)
    beta2 = beta.astype(jnp.float32).reshape(1, DIM_OUT)

    kernel = functools.partial(_sgu_kernel, heads=heads, eps=eps)

    # VMEM budget estimate (double buffers where pipelined) + headroom, clamped so
    # it also respects v7x's 64 MiB physical VMEM.
    in_bytes = jnp.dtype(x.dtype).itemsize
    mxu_bytes = jnp.dtype(mxu_dtype).itemsize
    est = (2 * block_m * DIM_OUT * in_bytes            # res row tiles
           + 2 * N * DIM_OUT * in_bytes                # gate (per-batch block)
           + 2 * heads * block_m * N * mxu_bytes       # weight row tiles
           + 2 * heads * block_m * 4                   # bias row tiles
           + 2 * DIM_OUT * 4                           # gamma + beta (single-buffered)
           + 2 * block_m * DIM_OUT * in_bytes          # out row tiles
           + N * DIM_OUT * mxu_bytes)                  # normalized-gate scratch
    vmem_limit = int(min(max(2 * est + (4 << 20), 32 << 20), 56 << 20))

    grid_spec = pltpu.PrefetchScalarGridSpec(
        num_scalar_prefetch=0,
        grid=(B, m_tiles),
        in_specs=[
            pl.BlockSpec((1, block_m, DIM_OUT), lambda b, m: (b, m, 0)),   # res rows
            pl.BlockSpec((1, N, DIM_OUT), lambda b, m: (b, 0, 0)),         # gate (whole seq)
            pl.BlockSpec((heads, block_m, N), lambda b, m: (0, m, 0)),     # W row tile
            pl.BlockSpec((heads, block_m, 1), lambda b, m: (0, m, 0)),     # bias row tile
            pl.BlockSpec((1, DIM_OUT), lambda b, m: (0, 0),
                         pipeline_mode=pl.Buffered(1)),                    # gamma (invariant)
            pl.BlockSpec((1, DIM_OUT), lambda b, m: (0, 0),
                         pipeline_mode=pl.Buffered(1)),                    # beta (invariant)
        ],
        out_specs=pl.BlockSpec((1, block_m, DIM_OUT), lambda b, m: (b, m, 0)),
        scratch_shapes=[pltpu.VMEM((N, DIM_OUT), mxu_dtype)],
    )

    return pl.pallas_call(
        kernel,
        out_shape=jax.ShapeDtypeStruct((B, N, DIM_OUT), x.dtype),
        grid_spec=grid_spec,
        compiler_params=pltpu.CompilerParams(
            dimension_semantics=("parallel", "arbitrary"),
            vmem_limit_bytes=vmem_limit,
        ),
    )(res, gate, w, bias3, gamma2, beta2)


def _reference(x, weight, bias, gamma, beta, heads=1, eps=1e-5):
    B, N, DIM = x.shape
    dim_out = DIM // 2
    res, gate = x[..., :dim_out], x[..., dim_out:]
    mean = jnp.mean(gate, axis=-1, keepdims=True)
    var = jnp.mean((gate - mean) ** 2, axis=-1, keepdims=True)
    gate = (gate - mean) / jnp.sqrt(var + eps) * gamma + beta
    gate = gate.reshape(B, N, heads, dim_out // heads).transpose(0, 2, 1, 3)   # b h n d
    gate = jnp.einsum('bhnd,hmn->bhmd', gate, weight)
    gate = gate + bias[None, :, :, None]
    gate = gate.transpose(0, 2, 1, 3).reshape(B, N, dim_out)
    return gate * res


if __name__ == "__main__":
    # Small shapes consistent with the module: dim_seq == sequence length N.
    B, N, DIM, HEADS = 2, 32, 64, 1
    DIM_OUT = DIM // 2
    key = jax.random.PRNGKey(0)
    kx, kw = jax.random.split(key)

    x = jax.random.normal(kx, (B, N, DIM), dtype=jnp.float32)

    # Deterministic parameter init mirroring the PyTorch __init__:
    init_eps = 0.001 / N
    weight = jax.random.uniform(kw, (HEADS, N, N), minval=-init_eps, maxval=init_eps,
                                dtype=jnp.float32)
    bias = jnp.ones((HEADS, N), dtype=jnp.float32)
    gamma = jnp.ones((DIM_OUT,), dtype=jnp.float32)   # nn.LayerNorm default weight
    beta = jnp.zeros((DIM_OUT,), dtype=jnp.float32)   # nn.LayerNorm default bias

    ref = _reference(x, weight, bias, gamma, beta, heads=HEADS)

    # Explicitly tiled path (2 row tiles per batch => grid (2, 2)).
    out = spatial_gating_unit(x, weight, bias, gamma, beta, heads=HEADS, block_m=16)
    jax.block_until_ready(out)
    assert out.shape == (B, N, DIM_OUT)
    assert jnp.allclose(out, ref, atol=2e-3, rtol=2e-3), "mismatch vs reference (tiled)"

    # Auto-tiled path (block_m == N here).
    out2 = spatial_gating_unit(x, weight, bias, gamma, beta, heads=HEADS)
    jax.block_until_ready(out2)
    assert jnp.allclose(out2, ref, atol=2e-3, rtol=2e-3), "mismatch vs reference (auto tile)"

    print("KERNEL_OK")
</pallas_src>

<mosaic_0001>
module attributes {stable_mosaic.version = 11 : i64} {
  func.func @_sgu_kernel(%arg0: i32, %arg1: i32, %arg2: memref<1x16x32xf32, #tpu.memory_space<vmem>>, %arg3: memref<1x32x32xf32, #tpu.memory_space<vmem>>, %arg4: memref<1x16x32xbf16, #tpu.memory_space<vmem>>, %arg5: memref<1x16x1xf32, #tpu.memory_space<vmem>>, %arg6: memref<1x32xf32, #tpu.memory_space<vmem>>, %arg7: memref<1x32xf32, #tpu.memory_space<vmem>>, %arg8: memref<1x16x32xf32, #tpu.memory_space<vmem>>, %arg9: memref<32x32xbf16, #tpu.memory_space<vmem>>) attributes {dimension_semantics = [#tpu.dimension_semantics<parallel>, #tpu.dimension_semantics<arbitrary>], iteration_bounds = array<i64: 2, 2>, scalar_prefetch = 0 : i64, scratch_operands = 1 : i64, tpu.core_type = #tpu.core_type<tc>, window_params = [{transform_indices = @transform_0, window_bounds = array<i64: 1, 16, 32>}, {transform_indices = @transform_1, window_bounds = array<i64: 1, 32, 32>}, {transform_indices = @transform_2, window_bounds = array<i64: 1, 16, 32>}, {transform_indices = @transform_3, window_bounds = array<i64: 1, 16, 1>}, {pipeline_mode = #tpu.pipeline_mode<synchronous>, transform_indices = @transform_4, window_bounds = array<i64: 1, 32>}, {pipeline_mode = #tpu.pipeline_mode<synchronous>, transform_indices = @transform_5, window_bounds = array<i64: 1, 32>}, {transform_indices = @transform_6, window_bounds = array<i64: 1, 16, 32>}]} {
    %c0_i32 = arith.constant 0 : i32
    %0 = arith.cmpi eq, %arg1, %c0_i32 : i32
    %1 = arith.extui %0 : i1 to i32
    %c0_i32_0 = arith.constant 0 : i32
    %2 = arith.cmpi ne, %1, %c0_i32_0 : i32
    scf.if %2 {
      %c0_14 = arith.constant 0 : index
      %c0_15 = arith.constant 0 : index
      %c0_16 = arith.constant 0 : index
      %17 = vector.load %arg3[%c0_14, %c0_15, %c0_16] : memref<1x32x32xf32, #tpu.memory_space<vmem>>, vector<1x32x32xf32>
      %18 = vector.shape_cast %17 : vector<1x32x32xf32> to vector<32x32xf32>
      %cst_17 = arith.constant dense<0.000000e+00> : vector<32xf32>
      %19 = vector.multi_reduction <add>, %18, %cst_17 [1] : vector<32x32xf32> to vector<32xf32>
      %20 = vector.shape_cast %19 : vector<32xf32> to vector<32x1xf32>
      %cst_18 = arith.constant 3.125000e-02 : f32
      %21 = vector.broadcast %cst_18 : f32 to vector<32x1xf32>
      %22 = arith.mulf %20, %21 : vector<32x1xf32>
      %23 = arith.mulf %18, %18 : vector<32x32xf32>
      %cst_19 = arith.constant dense<0.000000e+00> : vector<32xf32>
      %24 = vector.multi_reduction <add>, %23, %cst_19 [1] : vector<32x32xf32> to vector<32xf32>
      %25 = vector.shape_cast %24 : vector<32xf32> to vector<32x1xf32>
      %cst_20 = arith.constant 3.125000e-02 : f32
      %26 = vector.broadcast %cst_20 : f32 to vector<32x1xf32>
      %27 = arith.mulf %25, %26 : vector<32x1xf32>
      %28 = arith.mulf %22, %22 : vector<32x1xf32>
      %29 = arith.subf %27, %28 : vector<32x1xf32>
      %30 = vector.broadcast %22 : vector<32x1xf32> to vector<32x32xf32>
      %31 = arith.subf %18, %30 : vector<32x32xf32>
      %cst_21 = arith.constant 9.99999974E-6 : f32
      %32 = vector.broadcast %cst_21 : f32 to vector<32x1xf32>
      %33 = arith.addf %29, %32 : vector<32x1xf32>
      %34 = math.rsqrt %33 : vector<32x1xf32>
      %35 = vector.broadcast %34 : vector<32x1xf32> to vector<32x32xf32>
      %36 = arith.mulf %31, %35 : vector<32x32xf32>
      %c0_22 = arith.constant 0 : index
      %c0_23 = arith.constant 0 : index
      %37 = vector.load %arg6[%c0_22, %c0_23] : memref<1x32xf32, #tpu.memory_space<vmem>>, vector<1x32xf32>
      %38 = vector.shape_cast %37 : vector<1x32xf32> to vector<32xf32>
      %39 = vector.shape_cast %38 : vector<32xf32> to vector<1x32xf32>
      %40 = vector.broadcast %39 : vector<1x32xf32> to vector<32x32xf32>
      %41 = arith.mulf %36, %40 : vector<32x32xf32>
      %c0_24 = arith.constant 0 : index
      %c0_25 = arith.constant 0 : index
      %42 = vector.load %arg7[%c0_24, %c0_25] : memref<1x32xf32, #tpu.memory_space<vmem>>, vector<1x32xf32>
      %43 = vector.shape_cast %42 : vector<1x32xf32> to vector<32xf32>
      %44 = vector.shape_cast %43 : vector<32xf32> to vector<1x32xf32>
      %45 = vector.broadcast %44 : vector<1x32xf32> to vector<32x32xf32>
      %46 = arith.addf %41, %45 : vector<32x32xf32>
      %47 = arith.truncf %46 : vector<32x32xf32> to vector<32x32xbf16>
      %c0_26 = arith.constant 0 : index
      %c0_27 = arith.constant 0 : index
      %48 = vector.load %arg9[%c0_26, %c0_27] : memref<32x32xbf16, #tpu.memory_space<vmem>>, vector<32x32xbf16>
      tpu.vector_store %arg9[%c0_26, %c0_27], %47 {strides = array<i32>} : memref<32x32xbf16, #tpu.memory_space<vmem>>, vector<32x32xbf16>,
    } else {
    }
    %c0 = arith.constant 0 : index
    %c0_1 = arith.constant 0 : index
    %c0_2 = arith.constant 0 : index
    %3 = vector.load %arg2[%c0, %c0_1, %c0_2] : memref<1x16x32xf32, #tpu.memory_space<vmem>>, vector<1x16x32xf32>
    %4 = vector.shape_cast %3 : vector<1x16x32xf32> to vector<16x32xf32>
    %c0_3 = arith.constant 0 : index
    %c0_4 = arith.constant 0 : index
    %5 = vector.load %arg9[%c0_3, %c0_4] : memref<32x32xbf16, #tpu.memory_space<vmem>>, vector<32x32xbf16>
    %c0_5 = arith.constant 0 : index
    %c0_6 = arith.constant 0 : index
    %c0_7 = arith.constant 0 : index
    %6 = vector.load %arg4[%c0_5, %c0_6, %c0_7] : memref<1x16x32xbf16, #tpu.memory_space<vmem>>, vector<1x16x32xbf16>
    %7 = vector.shape_cast %6 : vector<1x16x32xbf16> to vector<16x32xbf16>
    %cst = arith.constant dense<0.000000e+00> : vector<16x32xf32>
    %8 = tpu.matmul %7, %5, %cst {dimension_numbers = #tpu.dot_dimension_numbers<[1], [0], [0], [1], [0, 0, 1, 1], [], []>} : vector<16x32xbf16>, vector<32x32xbf16>, vector<16x32xf32> -> vector<16x32xf32>
    %c0_8 = arith.constant 0 : index
    %c0_9 = arith.constant 0 : index
    %c0_10 = arith.constant 0 : index
    %9 = vector.load %arg5[%c0_8, %c0_9, %c0_10] : memref<1x16x1xf32, #tpu.memory_space<vmem>>, vector<1x16x1xf32>
    %10 = vector.shape_cast %9 : vector<1x16x1xf32> to vector<16x1xf32>
    %11 = vector.broadcast %10 : vector<16x1xf32> to vector<16x32xf32>
    %12 = arith.addf %8, %11 : vector<16x32xf32>
    %13 = arith.mulf %12, %4 : vector<16x32xf32>
    %c0_11 = arith.constant 0 : index
    %c0_12 = arith.constant 0 : index
    %c0_13 = arith.constant 0 : index
    %14 = vector.load %arg8[%c0_11, %c0_12, %c0_13] : memref<1x16x32xf32, #tpu.memory_space<vmem>>, vector<1x16x32xf32>
    %15 = vector.shape_cast %14 : vector<1x16x32xf32> to vector<16x32xf32>
    %16 = vector.shape_cast %13 : vector<16x32xf32> to vector<1x16x32xf32>
    tpu.vector_store %arg8[%c0_11, %c0_12, %c0_13], %16 {strides = array<i32>} : memref<1x16x32xf32, #tpu.memory_space<vmem>>, vector<1x16x32xf32>,
    return
  }
  func.func @transform_0(%arg0: i32, %arg1: i32) -> (i32, i32, i32) {
    %c0_i32 = arith.constant 0 : i32
    %c0_i32_0 = arith.constant 0 : i32
    return %arg0, %arg1, %c0_i32 : i32, i32, i32
  }
  func.func @transform_1(%arg0: i32, %arg1: i32) -> (i32, i32, i32) {
    %c0_i32 = arith.constant 0 : i32
    %c0_i32_0 = arith.constant 0 : i32
    %c0_i32_1 = arith.constant 0 : i32
    return %arg0, %c0_i32, %c0_i32_0 : i32, i32, i32
  }
  func.func @transform_2(%arg0: i32, %arg1: i32) -> (i32, i32, i32) {
    %c0_i32 = arith.constant 0 : i32
    %c0_i32_0 = arith.constant 0 : i32
    %c0_i32_1 = arith.constant 0 : i32
    return %c0_i32, %arg1, %c0_i32_0 : i32, i32, i32
  }
  func.func @transform_3(%arg0: i32, %arg1: i32) -> (i32, i32, i32) {
    %c0_i32 = arith.constant 0 : i32
    %c0_i32_0 = arith.constant 0 : i32
    %c0_i32_1 = arith.constant 0 : i32
    return %c0_i32, %arg1, %c0_i32_0 : i32, i32, i32
  }
  func.func @transform_4(%arg0: i32, %arg1: i32) -> (i32, i32) {
    %c0_i32 = arith.constant 0 : i32
    %c0_i32_0 = arith.constant 0 : i32
    %c0_i32_1 = arith.constant 0 : i32
    return %c0_i32, %c0_i32_0 : i32, i32
  }
  func.func @transform_5(%arg0: i32, %arg1: i32) -> (i32, i32) {
    %c0_i32 = arith.constant 0 : i32
    %c0_i32_0 = arith.constant 0 : i32
    %c0_i32_1 = arith.constant 0 : i32
    return %c0_i32, %c0_i32_0 : i32, i32
  }
  func.func @transform_6(%arg0: i32, %arg1: i32) -> (i32, i32, i32) {
    %c0_i32 = arith.constant 0 : i32
    %c0_i32_0 = arith.constant 0 : i32
    return %arg0, %arg1, %c0_i32 : i32, i32, i32
  }
}

</mosaic_0001>

<llo_original>
// kernel: tpu_custom_call.1
$region0: #{tpu_custom_call.1}
  #allocation0 [shape = 'u32[]', space=smem, size = 0x4, offset = 0x4, fixed_abs, tag = 'smem constant byte address 0x4 - core index']
  #allocation1 [shape = 'u32[144,128]{1,0:T(1,128)}', space=vmem, size = 0x12000, scoped, tag = 'internal scratch']
  #allocation2 [shape = 'bf16[32,32]{1,0:T(16,128)(2,1)}', space=vmem, size = 0x2000, scoped, tag = 'scratch operand']
  %s0 = inlined_call_operand.hbm [shape: f32[2,32,32], index: 0, kind: input, shape index: {}]
  %s1 = inlined_call_operand.hbm [shape: f32[2,32,32], index: 1, kind: input, shape index: {}]
  %s2 = inlined_call_operand.vmem [shape: bf16[1,32,32], index: 2, kind: input, shape index: {}]
  %s3 = inlined_call_operand.vmem [shape: f32[1,32,1], index: 3, kind: input, shape index: {}]
  %s4 = inlined_call_operand.vmem [shape: f32[1,32], index: 4, kind: input, shape index: {}]
  %s5 = inlined_call_operand.vmem [shape: f32[1,32], index: 5, kind: input, shape index: {}]
  %s6 = inlined_call_operand.hbm [shape: f32[2,32,32], index: 6, kind: output, shape index: {}]
  %s7 = sld [smem:[#allocation0]]
  $region69: #{tpu_custom_call.1} parent=0
    _
  %s9 = ssub.s32 1, %s7
  %s10 = scalar_select 0, %s9, %s7
  $region1: #{tpu_custom_call.1} parent=0
    #allocation3 [shape = 'u8[16384]{0}', space=vmem, size = 0x4000, scoped, tag = 'input window, operand 0']
    #allocation4 [shape = 's32[2]{0}', space=sflag, size = 0x8, scoped, tag = 'scoped memory for tpu_custom_call.1']
    #allocation5 [shape = 's32[2]{0}', space=sflag, size = 0x8, scoped, tag = 'scoped memory for tpu_custom_call.1']
    #allocation6 [shape = 'u8[32768]{0}', space=vmem, size = 0x8000, scoped, tag = 'input window, operand 1']
    #allocation7 [shape = 's32[2]{0}', space=sflag, size = 0x8, scoped, tag = 'scoped memory for tpu_custom_call.1']
    #allocation8 [shape = 'u8[16384]{0}', space=vmem, size = 0x4000, scoped, tag = 'output window, operand 0']
    %11 = vsyncpa [#allocation4], 0
    %s12 = scalar_lea.sflag [#allocation4], 1
    %13 = vsyncpa %s12, 0
    %14 = vsyncpa [#allocation7], 0
    %s15 = scalar_lea.sflag [#allocation7], 1
    %16 = vsyncpa %s15, 0
    %17 = vsyncpa [#allocation5], 0
    %s18 = scalar_lea.sflag [#allocation5], 1
    %19 = vsyncpa %s18, 0
    loop: start=0, step=1, limit=6
    $region2: #{tpu_custom_call.1} parent=1 // loop_pre_header
      _
    $region3: #{tpu_custom_call.1} parent=1 // loop_header
      %s21 = sphi 0, %s25
      %p22 = scmp.ge.s32.totalorder %s21, 6
      %s28 = sphi 0, %s40
      %s29 = sphi 0, %s36
      %s30 = sphi 0, %s28
      %s31 = sphi 0, %s29
      %s32 = sphi 0, %s30
      %s33 = sphi 0, %s31
      %s45 = sphi 0, %s47
      %s48 = sphi 0, %s45
      %s49 = sphi 0, %s48
      %s65 = sphi 0, %s49
      %s71 = sphi 0, %s73
      %s74 = sphi 0, %s71
      %s75 = sphi 0, %s74
      %s91 = sphi 0, %s75
      %s97 = sphi 0, %s99
      %s100 = sphi 0, %s97
      %s101 = sphi 0, %s100
      %s117 = sphi 0, %s101
      %s123 = sphi 0, %s125
      %s126 = sphi 0, %s123
      %s127 = sphi 0, %s126
      %s143 = sphi 0, %s127
      %s147 = sphi 0, %s147
      %s149 = sphi 0, %s147
      %s150 = sphi 0, %s149
      %s164 = sphi 0, %s150
      %s168 = sphi 0, %s168
      %s170 = sphi 0, %s168
      %s171 = sphi 0, %s170
      %s185 = sphi 0, %s171
      %s193 = sphi 0, %s195
      %s196 = sphi 0, %s193
      %s197 = sphi 0, %s196
      %s213 = sphi 0, %s197
    $region4: #{tpu_custom_call.1} parent=1 // loop_header_branch
      %24 = sbr.rel (%p22) target = $region8
    $region5: #{tpu_custom_call.1} parent=1 // loop_body
      %s26 = ssub.s32 %s21, 1
      %s27 = ssub.s32 %s21, 2
      %s34 = sadd.s32 1, %s29
      %p35 = scmp.ge.s32.totalorder %s34, 2
      %s36 = scalar_select %p35, 0, %s34
      %s37 = sadd.s32 1, %s28
      %s38 = scalar_select %p35, %s37, %s28
      %p39 = scmp.ge.s32.totalorder %s38, 2
      %s40 = scalar_select %p39, 0, %s38
      %s41 = ssub.s32 %s28, %s40
      %s42 = ssub.s32 %s29, %s36
      %s43 = sor.u32 %s41, %s42
      %p44 = scmp.eq.s32.totalorder %s43, 0
      %s46 = sadd.s32 %s45, 1
      %s47 = scalar_select %p44, %s45, %s46
      %p50 = pneg %p44
      %p51 = scmp.eq.s32.totalorder %s21, 3
      %p52 = por %p50, %p51
      %p53 = scmp.ne.s32.totalorder %s45, %s48
      %p54 = scmp.eq.s32.totalorder %s21, 0
      %p55 = por %p53, %p54
      %p56 = scmp.ne.s32.totalorder %s45, %s48
      %p57 = scmp.eq.s32.totalorder %s26, 3
      %p58 = por %p56, %p57
      %p59 = scmp.ne.s32.totalorder %s48, %s49
      %p60 = scmp.eq.s32.totalorder %s26, 0
      %p61 = por %p59, %p60
      %p62 = scmp.ne.s32.totalorder %s48, %s49
      %p63 = scmp.eq.s32.totalorder %s27, 3
      %p64 = por %p62, %p63
      %p66 = scmp.ne.s32.totalorder %s49, %s65
      %p67 = scmp.eq.s32.totalorder %s27, 0
      %p68 = por %p66, %p67
      %s69 = ssub.s32 %s28, %s40
      %p70 = scmp.eq.s32.totalorder %s69, 0
      %s72 = sadd.s32 %s71, 1
      %s73 = scalar_select %p70, %s71, %s72
      %p76 = pneg %p70
      %p77 = scmp.eq.s32.totalorder %s21, 3
      %p78 = por %p76, %p77
      %p79 = scmp.ne.s32.totalorder %s71, %s74
      %p80 = scmp.eq.s32.totalorder %s21, 0
      %p81 = por %p79, %p80
      %p82 = scmp.ne.s32.totalorder %s71, %s74
      %p83 = scmp.eq.s32.totalorder %s26, 3
      %p84 = por %p82, %p83
      %p85 = scmp.ne.s32.totalorder %s74, %s75
      %p86 = scmp.eq.s32.totalorder %s26, 0
      %p87 = por %p85, %p86
      %p88 = scmp.ne.s32.totalorder %s74, %s75
      %p89 = scmp.eq.s32.totalorder %s27, 3
      %p90 = por %p88, %p89
      %p92 = scmp.ne.s32.totalorder %s75, %s91
      %p93 = scmp.eq.s32.totalorder %s27, 0
      %p94 = por %p92, %p93
      %s95 = ssub.s32 %s29, %s36
      %p96 = scmp.eq.s32.totalorder %s95, 0
      %s98 = sadd.s32 %s97, 1
      %s99 = scalar_select %p96, %s97, %s98
      %p102 = pneg %p96
      %p103 = scmp.eq.s32.totalorder %s21, 3
      %p104 = por %p102, %p103
      %p105 = scmp.ne.s32.totalorder %s97, %s100
      %p106 = scmp.eq.s32.totalorder %s21, 0
      %p107 = por %p105, %p106
      %p108 = scmp.ne.s32.totalorder %s97, %s100
      %p109 = scmp.eq.s32.totalorder %s26, 3
      %p110 = por %p108, %p109
      %p111 = scmp.ne.s32.totalorder %s100, %s101
      %p112 = scmp.eq.s32.totalorder %s26, 0
      %p113 = por %p111, %p112
      %p114 = scmp.ne.s32.totalorder %s100, %s101
      %p115 = scmp.eq.s32.totalorder %s27, 3
      %p116 = por %p114, %p115
      %p118 = scmp.ne.s32.totalorder %s101, %s117
      %p119 = scmp.eq.s32.totalorder %s27, 0
      %p120 = por %p118, %p119
      %s121 = ssub.s32 %s29, %s36
      %p122 = scmp.eq.s32.totalorder %s121, 0
      %s124 = sadd.s32 %s123, 1
      %s125 = scalar_select %p122, %s123, %s124
      %p128 = pneg %p122
      %p129 = scmp.eq.s32.totalorder %s21, 3
      %p130 = por %p128, %p129
      %p131 = scmp.ne.s32.totalorder %s123, %s126
      %p132 = scmp.eq.s32.totalorder %s21, 0
      %p133 = por %p131, %p132
      %p134 = scmp.ne.s32.totalorder %s123, %s126
      %p135 = scmp.eq.s32.totalorder %s26, 3
      %p136 = por %p134, %p135
      %p137 = scmp.ne.s32.totalorder %s126, %s127
      %p138 = scmp.eq.s32.totalorder %s26, 0
      %p139 = por %p137, %p138
      %p140 = scmp.ne.s32.totalorder %s126, %s127
      %p141 = scmp.eq.s32.totalorder %s27, 3
      %p142 = por %p140, %p141
      %p144 = scmp.ne.s32.totalorder %s127, %s143
      %p145 = scmp.eq.s32.totalorder %s27, 0
      %p146 = por %p144, %p145
      %s148 = sadd.s32 %s147, 1
      %p151 = scmp.eq.s32.totalorder %s21, 3
      %p152 = scmp.ne.s32.totalorder %s147, %s149
      %p153 = scmp.eq.s32.totalorder %s21, 0
      %p154 = por %p152, %p153
      %p155 = scmp.ne.s32.totalorder %s147, %s149
      %p156 = scmp.eq.s32.totalorder %s26, 3
      %p157 = por %p155, %p156
      %p158 = scmp.ne.s32.totalorder %s149, %s150
      %p159 = scmp.eq.s32.totalorder %s26, 0
      %p160 = por %p158, %p159
      %p161 = scmp.ne.s32.totalorder %s149, %s150
      %p162 = scmp.eq.s32.totalorder %s27, 3
      %p163 = por %p161, %p162
      %p165 = scmp.ne.s32.totalorder %s150, %s164
      %p166 = scmp.eq.s32.totalorder %s27, 0
      %p167 = por %p165, %p166
      %s169 = sadd.s32 %s168, 1
      %p172 = scmp.eq.s32.totalorder %s21, 3
      %p173 = scmp.ne.s32.totalorder %s168, %s170
      %p174 = scmp.eq.s32.totalorder %s21, 0
      %p175 = por %p173, %p174
      %p176 = scmp.ne.s32.totalorder %s168, %s170
      %p177 = scmp.eq.s32.totalorder %s26, 3
      %p178 = por %p176, %p177
      %p179 = scmp.ne.s32.totalorder %s170, %s171
      %p180 = scmp.eq.s32.totalorder %s26, 0
      %p181 = por %p179, %p180
      %p182 = scmp.ne.s32.totalorder %s170, %s171
      %p183 = scmp.eq.s32.totalorder %s27, 3
      %p184 = por %p182, %p183
      %p186 = scmp.ne.s32.totalorder %s171, %s185
      %p187 = scmp.eq.s32.totalorder %s27, 0
      %p188 = por %p186, %p187
      %s189 = ssub.s32 %s28, %s40
      %s190 = ssub.s32 %s29, %s36
      %s191 = sor.u32 %s189, %s190
      %p192 = scmp.eq.s32.totalorder %s191, 0
      %s194 = sadd.s32 %s193, 1
      %s195 = scalar_select %p192, %s193, %s194
      %p198 = pneg %p192
      %p199 = scmp.eq.s32.totalorder %s21, 3
      %p200 = por %p198, %p199
      %p201 = scmp.ne.s32.totalorder %s193, %s196
      %p202 = scmp.eq.s32.totalorder %s21, 0
      %p203 = por %p201, %p202
      %p204 = scmp.ne.s32.totalorder %s193, %s196
      %p205 = scmp.eq.s32.totalorder %s26, 3
      %p206 = por %p204, %p205
      %p207 = scmp.ne.s32.totalorder %s196, %s197
      %p208 = scmp.eq.s32.totalorder %s26, 0
      %p209 = por %p207, %p208
      %p210 = scmp.ne.s32.totalorder %s196, %s197
      %p211 = scmp.eq.s32.totalorder %s27, 3
      %p212 = por %p210, %p211
      %p214 = scmp.ne.s32.totalorder %s197, %s213
      %p215 = scmp.eq.s32.totalorder %s27, 0
      %p216 = por %p214, %p215
      %p217 = scmp.le.s32.totalorder 1, %s21
      %p218 = scmp.lt.s32.totalorder %s21, 5
      %p219 = pnand %p217, %p218
      %p220 = pneg %p219
      // Predicated region
      $region9: #{tpu_custom_call.1} parent=5 // pred_check
        _
      $region10: #{tpu_custom_call.1} parent=5 // pred_check_branch
        %222 = sbr.rel (%p219) target = $region12
      $region11: #{tpu_custom_call.1} parent=5 // pred_region
        %s223 = ssub.s32 %s21, 1
        // Predicated region
        $region13: #{tpu_custom_call.1} parent=11 // pred_check
          %p224 = pneg %p160
        $region14: #{tpu_custom_call.1} parent=11 // pred_check_branch
          %226 = sbr.rel (%p224) target = $region16
        $region15: #{tpu_custom_call.1} parent=11 // pred_region
          _
        $region16: #{tpu_custom_call.1} parent=11 // pred_fallthru
          _
        // Predicated region
        $region17: #{tpu_custom_call.1} parent=11 // pred_check
          %p227 = pneg %p181
        $region18: #{tpu_custom_call.1} parent=11 // pred_check_branch
          %229 = sbr.rel (%p227) target = $region20
        $region19: #{tpu_custom_call.1} parent=11 // pred_region
          _
        $region20: #{tpu_custom_call.1} parent=11 // pred_fallthru
          _
      $region12: #{tpu_custom_call.1} parent=5 // pred_fallthru
        _
      %p230 = scmp.lt.s32.totalorder %s21, 4
      // Predicated region
      $region21: #{tpu_custom_call.1} parent=5 // pred_check
        %p231 = pneg %p230
      $region22: #{tpu_custom_call.1} parent=5 // pred_check_branch
        %233 = sbr.rel (%p231) target = $region24
      $region23: #{tpu_custom_call.1} parent=5 // pred_region
        // Predicated region
        $region25: #{tpu_custom_call.1} parent=23 // pred_check
          %p234 = pneg %p55
        $region26: #{tpu_custom_call.1} parent=23 // pred_check_branch
          %236 = sbr.rel (%p234) target = $region28
        $region27: #{tpu_custom_call.1} parent=23 // pred_region
          %s237 = sand.u32 %s45, 1
          %s238 = scalar_lea.sflag [#allocation4], %s237
          %s239 = sand.u32 %s45, 1
          %s240 = smul.addr %s239, 16
          %s241 = scalar_lea.vmem [#allocation3], %s240
          %s242 = smul.u32 2, %s29
          %s244 = ssub.s32 256, 256
          %245 = vsyncadd %s238, %s244
          %s246 = smul.addr %s28, 4
          %s247 = sadd.s32 %s242, %s246
          %s248 = smul.addr %s247, 128
          %s249 = scalar_lea.hbm %s0, %s248
          %s250 = sshll.u32 %s241, 4
          %s251 = int_to_ptr.vmem [resolvable:$true] %s250
          %256 = dma.hbm_to_vmem [thread:$0]  %s249, 256, %s251, %s238, 128, 128, 8
        $region28: #{tpu_custom_call.1} parent=23 // pred_fallthru
          _
        // Predicated region
        $region29: #{tpu_custom_call.1} parent=23 // pred_check
          %p257 = pneg %p81
        $region30: #{tpu_custom_call.1} parent=23 // pred_check_branch
          %259 = sbr.rel (%p257) target = $region32
        $region31: #{tpu_custom_call.1} parent=23 // pred_region
          %s260 = sand.u32 %s71, 1
          %s261 = scalar_lea.sflag [#allocation7], %s260
          %s262 = sand.u32 %s71, 1
          %s263 = smul.addr %s262, 32
          %s264 = scalar_lea.vmem [#allocation6], %s263
          %s266 = ssub.s32 512, 512
          %267 = vsyncadd %s261, %s266
          %s268 = smul.addr %s28, 4
          %s269 = smul.addr %s268, 128
          %s270 = scalar_lea.hbm %s1, %s269
          %s271 = sshll.u32 %s264, 4
          %s272 = int_to_ptr.vmem [resolvable:$true] %s271
          %277 = dma.hbm_to_vmem [thread:$0]  %s270, 512, %s272, %s261, 128, 128, 8
        $region32: #{tpu_custom_call.1} parent=23 // pred_fallthru
          _
        // Predicated region
        $region33: #{tpu_custom_call.1} parent=23 // pred_check
          %p278 = pneg %p107
        $region34: #{tpu_custom_call.1} parent=23 // pred_check_branch
          %280 = sbr.rel (%p278) target = $region36
        $region35: #{tpu_custom_call.1} parent=23 // pred_region
          %s281 = smul.u32 2, %s29
          %p282 = scmp.lt.s32.totalorder %s281, 3
          %s283 = scalar_select %p282, %s281, 3
          %s284 = smul.addr %s283, 4
          %s285 = scalar_lea.vmem %s2, %s284
          %s286 = smul.u32 2, %s29
        $region36: #{tpu_custom_call.1} parent=23 // pred_fallthru
          _
        // Predicated region
        $region37: #{tpu_custom_call.1} parent=23 // pred_check
          %p287 = pneg %p133
        $region38: #{tpu_custom_call.1} parent=23 // pred_check_branch
          %289 = sbr.rel (%p287) target = $region40
        $region39: #{tpu_custom_call.1} parent=23 // pred_region
          %s290 = smul.u32 2, %s29
          %p291 = scmp.lt.s32.totalorder %s290, 3
          %s292 = scalar_select %p291, %s290, 3
          %s293 = smul.addr %s292, 8
          %s294 = scalar_lea.vmem %s3, %s293
          %s295 = smul.u32 2, %s29
        $region40: #{tpu_custom_call.1} parent=23 // pred_fallthru
          _
      $region24: #{tpu_custom_call.1} parent=5 // pred_fallthru
        _
      %p296 = scmp.le.s32.totalorder 1, %s21
      %p297 = scmp.lt.s32.totalorder %s21, 5
      %p298 = pnand %p296, %p297
      %p299 = pneg %p298
      // Predicated region
      $region41: #{tpu_custom_call.1} parent=5 // pred_check
        _
      $region42: #{tpu_custom_call.1} parent=5 // pred_check_branch
        %301 = sbr.rel (%p298) target = $region44
      $region43: #{tpu_custom_call.1} parent=5 // pred_region
        %s302 = ssub.s32 %s21, 1
        %s303 = sand.u32 %s48, 1
        %s304 = scalar_lea.sflag [#allocation4], %s303
        %s305 = sand.u32 %s48, 1
        %s306 = smul.addr %s305, 16
        %s307 = scalar_lea.vmem [#allocation3], %s306
        // Predicated region
        $region45: #{tpu_custom_call.1} parent=43 // pred_check
          %p308 = pneg %p61
        $region46: #{tpu_custom_call.1} parent=43 // pred_check_branch
          %310 = sbr.rel (%p308) target = $region48
        $region47: #{tpu_custom_call.1} parent=43 // pred_region
          %311 = dma.done %s304, 256
        $region48: #{tpu_custom_call.1} parent=43 // pred_fallthru
          _
        %s312 = sand.u32 %s74, 1
        %s313 = scalar_lea.sflag [#allocation7], %s312
        %s314 = sand.u32 %s74, 1
        %s315 = smul.addr %s314, 32
        %s316 = scalar_lea.vmem [#allocation6], %s315
        // Predicated region
        $region49: #{tpu_custom_call.1} parent=43 // pred_check
          %p317 = pneg %p87
        $region50: #{tpu_custom_call.1} parent=43 // pred_check_branch
          %319 = sbr.rel (%p317) target = $region52
        $region51: #{tpu_custom_call.1} parent=43 // pred_region
          %320 = dma.done %s313, 512
        $region52: #{tpu_custom_call.1} parent=43 // pred_fallthru
          _
        %s321 = sand.u32 %s48, 1
        %s322 = scalar_lea.sflag [#allocation4], %s321
        %s323 = sand.u32 %s48, 1
        %s324 = smul.addr %s323, 16
        %s325 = scalar_lea.vmem [#allocation3], %s324
        %p326 = pneg %p61
        %p327 = pneg %p58
        %s328 = sand.u32 %s74, 1
        %s329 = scalar_lea.sflag [#allocation7], %s328
        %s330 = sand.u32 %s74, 1
        %s331 = smul.addr %s330, 32
        %s332 = scalar_lea.vmem [#allocation6], %s331
        %p333 = pneg %p87
        %p334 = pneg %p84
        %s335 = smul.u32 2, %s31
        %p336 = scmp.lt.s32.totalorder %s335, 3
        %s337 = scalar_select %p336, %s335, 3
        %s338 = smul.addr %s337, 4
        %s339 = scalar_lea.vmem %s2, %s338
        %p340 = pneg %p113
        %p341 = pneg %p110
        %s342 = smul.u32 2, %s31
        %p343 = scmp.lt.s32.totalorder %s342, 3
        %s344 = scalar_select %p343, %s342, 3
        %s345 = smul.addr %s344, 8
        %s346 = scalar_lea.vmem %s3, %s345
        %p347 = pneg %p139
        %p348 = pneg %p136
        %p349 = pneg %p160
        %p350 = pneg %p157
        %p351 = pneg %p181
        %p352 = pneg %p178
        %p353 = pneg %p209
        %p354 = pneg %p206
        %s355 = sand.u32 %s196, 1
        %s356 = scalar_lea.sflag [#allocation5], %s355
        %s357 = sand.u32 %s196, 1
        %s358 = smul.addr %s357, 16
        %s359 = scalar_lea.vmem [#allocation8], %s358
        %s360 = smul.u32 2, %s31
        %s361 = smul.u32 2, %s31
        %p362 = scmp.lt.s32.totalorder %s361, 3
        %s363 = scalar_select %p362, %s361, 3
        %s364 = smul.addr %s363, 4
        %s365 = scalar_lea.vmem %s2, %s364
        %s366 = smul.u32 2, %s31
        %s367 = smul.u32 2, %s31
        %p368 = scmp.lt.s32.totalorder %s367, 3
        %s369 = scalar_select %p368, %s367, 3
        %s370 = smul.addr %s369, 8
        %s371 = scalar_lea.vmem %s3, %s370
        %s372 = smul.u32 2, %s31
        %s373 = smul.u32 2, %s31
        %p375 = scmp.eq.s32.totalorder %s31, 0
        // Predicated region
        $region53: #{tpu_custom_call.1} parent=43 // pred_check
          %p376 = pneg %p375
        $region54: #{tpu_custom_call.1} parent=43 // pred_check_branch
          %378 = sbr.rel (%p376) target = $region56
        $region55: #{tpu_custom_call.1} parent=43 // pred_region
          %v379 = vld [vmem:[%s316] sm:$0xff]
          %v380 = vld [vmem:[%s316 + $0x8] sm:$0xff]
          %v381 = vld [vmem:[%s316 + $0x10] sm:$0xff]
          %v382 = vld [vmem:[%s316 + $0x18] sm:$0xff]
          %vm383 = vcmask 261120
          %v384 = vsel %vm383, %v379, 0.0
          %385 = vadd.xlane.f32.xlu0 %v384
          %v386 = vpop.xlane.xlu0 %385
          %v387 = vsel %vm383, %v380, 0.0
          %388 = vadd.xlane.f32.xlu0 %v387
          %v389 = vpop.xlane.xlu0 %388
          %v390 = vsel %vm383, %v381, 0.0
          %391 = vadd.xlane.f32.xlu0 %v390
          %v392 = vpop.xlane.xlu0 %391
          %v393 = vsel %vm383, %v382, 0.0
          %394 = vadd.xlane.f32.xlu0 %v393
          %v395 = vpop.xlane.xlu0 %394
          %v396 = vmul.f32 %v386, 0.03125
          %v397 = vmul.f32 %v389, 0.03125
          %v398 = vmul.f32 %v392, 0.03125
          %v399 = vmul.f32 %v395, 0.03125
          %v400 = vmul.f32 %v379, %v379
          %v401 = vmul.f32 %v380, %v380
          %v402 = vmul.f32 %v381, %v381
          %v403 = vmul.f32 %v382, %v382
          %v404 = vsel %vm383, %v400, 0.0
          %405 = vadd.xlane.f32.xlu0 %v404
          %v406 = vpop.xlane.xlu0 %405
          %v407 = vsel %vm383, %v401, 0.0
          %408 = vadd.xlane.f32.xlu0 %v407
          %v409 = vpop.xlane.xlu0 %408
          %v410 = vsel %vm383, %v402, 0.0
          %411 = vadd.xlane.f32.xlu0 %v410
          %v412 = vpop.xlane.xlu0 %411
          %v413 = vsel %vm383, %v403, 0.0
          %414 = vadd.xlane.f32.xlu0 %v413
          %v415 = vpop.xlane.xlu0 %414
          %v416 = vmul.f32 %v406, 0.03125
          %v417 = vmul.f32 %v409, 0.03125
          %v418 = vmul.f32 %v412, 0.03125
          %v419 = vmul.f32 %v415, 0.03125
          %v420 = vmul.f32 %v396, %v396
          %v421 = vmul.f32 %v397, %v397
          %v422 = vmul.f32 %v398, %v398
          %v423 = vmul.f32 %v399, %v399
          %v424 = vsub.f32 %v416, %v420
          %v425 = vsub.f32 %v417, %v421
          %v426 = vsub.f32 %v418, %v422
          %v427 = vsub.f32 %v419, %v423
          %v428 = vsub.f32 %v379, %v396
          %v429 = vsub.f32 %v380, %v397
          %v430 = vsub.f32 %v381, %v398
          %v431 = vsub.f32 %v382, %v399
          %v432 = vadd.f32 %v424, 1e-05
          %v433 = vadd.f32 %v425, 1e-05
          %v434 = vadd.f32 %v426, 1e-05
          %v435 = vadd.f32 %v427, 1e-05
          %v436 = vrsqrt.pop %v432
          %v437 = vrsqrt.pop %v433
          %v438 = vrsqrt.pop %v434
          %v439 = vrsqrt.pop %v435
          %v440 = vmul.f32 %v428, %v436
          %v441 = vmul.f32 %v429, %v437
          %v442 = vmul.f32 %v430, %v438
          %v443 = vmul.f32 %v431, %v439
          %v444 = vld [vmem:[%s4] sm:$0x1]
          %v446 = vlaneseq
          %v447 = vshrl.u32 %v446, 7
          %v448 = vsub.s32 0, %v447
          %v449 = vrot.slane %v444, %v448
          %v451 = vmul.f32 %v440, %v449
          %v452 = vmul.f32 %v441, %v449
          %v453 = vmul.f32 %v442, %v449
          %v454 = vmul.f32 %v443, %v449
          %v455 = vld [vmem:[%s5] sm:$0x1]
          %v457 = vlaneseq
          %v458 = vshrl.u32 %v457, 7
          %v459 = vsub.s32 0, %v458
          %v460 = vrot.slane %v455, %v459
          %v462 = vadd.f32 %v451, %v460
          %v463 = vadd.f32 %v452, %v460
          %v464 = vadd.f32 %v453, %v460
          %v465 = vadd.f32 %v454, %v460
          %v466 = vpack.c.bf16 %v463, %v462
          %v467 = vpack.c.bf16 %v465, %v464
          %468 = vst.msk [vmem:[#allocation2] sm:$0xff] %vm383, %v466
          %469 = vst.msk [vmem:[#allocation2 + $0x8] sm:$0xff] %vm383, %v467
        $region56: #{tpu_custom_call.1} parent=43 // pred_fallthru
          _
        %v470 = vld [vmem:[%s307] sm:$0xff]
        %v471 = vld [vmem:[%s307 + $0x8] sm:$0xff]
        %v472 = vld [vmem:[#allocation2] sm:$0xff]
        %v473 = vld [vmem:[#allocation2 + $0x8] sm:$0xff]
        %v474 = vld [vmem:[%s365] sm:$0xf]
        %v475 = vld [vmem:[%s365 + $0x4] sm:$0xf]
        %v476 = vld [vmem:[%s371] sm:$0xff]
        %v477 = vld [vmem:[%s371 + $0x8] sm:$0xff]
        %479 = vset.pattern.permute.xlu0 0
        %480 = vperm.xlu0 %479, %v476
        %v481 = vpop.permute.xlu0 %480
        %484 = vset.pattern.permute.xlu0 0
        %485 = vperm.xlu0 %484, %v477
        %v486 = vpop.permute.xlu0 %485
        %v490 = vunpack.c.l.b16 %v474
        %v491 = vunpack.c.l.b16 %v475
        %v492 = vpack.c.b16 %v491, %v490
        %vm493 = vcmask 261120
        %v495 = vsel %vm493, %v492, 0
        %497 = vmatprep.subr.bf16.mxu0 0
        %498 = vmatpush1.bf16.msra.mxu0 %v472
        %499 = vmatprep.subr.bf16.mxu0 0
        %500 = vmatpush1.bf16.msra.mxu0 %v473
        %501 = vmatprep.subr.bf16.mxu0 0
        %502 = vmatpush1.bf16.msra.mxu0 0
        %503 = vmatprep.subr.bf16.mxu0 0
        %504 = vmatpush1.bf16.msra.mxu0 0
        %505 = vmatprep.subr.bf16.mxu0 0
        %506 = vmatpush1.bf16.msra.mxu0 0
        %507 = vmatprep.subr.bf16.mxu0 0
        %508 = vmatpush1.bf16.msra.mxu0 0
        %509 = vmatprep.subr.bf16.mxu0 0
        %510 = vmatpush1.bf16.msra.mxu0 0
        %511 = vmatprep.subr.bf16.mxu0 0
        %512 = vmatpush1.bf16.msra.mxu0 0
        %513 = vmatprep.subr.bf16.mxu0 0
        %514 = vmatpush1.bf16.msra.mxu0 0
        %515 = vmatprep.subr.bf16.mxu0 0
        %516 = vmatpush1.bf16.msra.mxu0 0
        %517 = vmatprep.subr.bf16.mxu0 0
        %518 = vmatpush1.bf16.msra.mxu0 0
        %519 = vmatprep.subr.bf16.mxu0 0
        %520 = vmatpush1.bf16.msra.mxu0 0
        %521 = vmatprep.subr.bf16.mxu0 0
        %522 = vmatpush1.bf16.msra.mxu0 0
        %523 = vmatprep.subr.bf16.mxu0 0
        %524 = vmatpush1.bf16.msra.mxu0 0
        %525 = vmatprep.subr.bf16.mxu0 0
        %526 = vmatpush1.bf16.msra.mxu0 0
        %527 = vmatprep.subr.bf16.mxu0 0
        %528 = vmatpush1.bf16.msra.mxu0 0
        %529 = vmatprep.mubr.bf16.mxu0 0
        %530 = vmatmul.mubr.bf16.gmra.mrb[0].mxu0 %v495
        %v531 = vpop.f32.mrb[0].mxu0
        %v532 = vadd.f32 %v481, %v531
        %v533 = vpop.f32.mrb[0].mxu0
        %v534 = vpop.f32.mrb[0].mxu0
        %v535 = vadd.f32 %v486, %v534
        %v536 = vpop.f32.mrb[0].mxu0
        %537 = vdwg.mxu0
        %v538 = vmul.f32 %v532, %v470
        %v539 = vmul.f32 %v535, %v471
        %540 = vst.msk [vmem:[%s359] sm:$0xff] %vm493, %v538
        %541 = vst.msk [vmem:[%s359 + $0x8] sm:$0xff] %vm493, %v539
        %s542 = sand.u32 %s196, 1
        %s543 = scalar_lea.sflag [#allocation5], %s542
        %s544 = sand.u32 %s196, 1
        %s545 = smul.addr %s544, 16
        %s546 = scalar_lea.vmem [#allocation8], %s545
        // Predicated region
        $region57: #{tpu_custom_call.1} parent=43 // pred_check
          %p547 = pneg %p206
        $region58: #{tpu_custom_call.1} parent=43 // pred_check_branch
          %549 = sbr.rel (%p547) target = $region60
        $region59: #{tpu_custom_call.1} parent=43 // pred_region
          %s550 = smul.u32 2, %s31
          %s552 = ssub.s32 256, 256
          %553 = vsyncadd %s543, %s552
          %s554 = smul.addr %s30, 4
          %s555 = sadd.s32 %s550, %s554
          %s556 = smul.addr %s555, 128
          %s557 = scalar_lea.hbm %s6, %s556
          %s558 = sshll.u32 %s546, 4
          %s559 = int_to_ptr.vmem [resolvable:$true] %s558
          %564 = dma.vmem_to_hbm [thread:$0]  %s559, 256, %s557, %s543, 128, 128, 8
        $region60: #{tpu_custom_call.1} parent=43 // pred_fallthru
          _
      $region44: #{tpu_custom_call.1} parent=5 // pred_fallthru
        _
      %p565 = scmp.le.s32.totalorder 2, %s21
      // Predicated region
      $region61: #{tpu_custom_call.1} parent=5 // pred_check
        %p566 = pneg %p565
      $region62: #{tpu_custom_call.1} parent=5 // pred_check_branch
        %568 = sbr.rel (%p566) target = $region64
      $region63: #{tpu_custom_call.1} parent=5 // pred_region
        %s569 = ssub.s32 %s21, 2
        // Predicated region
        $region65: #{tpu_custom_call.1} parent=63 // pred_check
          %p570 = pneg %p212
        $region66: #{tpu_custom_call.1} parent=63 // pred_check_branch
          %572 = sbr.rel (%p570) target = $region68
        $region67: #{tpu_custom_call.1} parent=63 // pred_region
          %s573 = sand.u32 %s197, 1
          %s574 = scalar_lea.sflag [#allocation5], %s573
          %s575 = sand.u32 %s197, 1
          %s576 = smul.addr %s575, 16
          %s577 = scalar_lea.vmem [#allocation8], %s576
          %578 = dma.done %s574, 256
        $region68: #{tpu_custom_call.1} parent=63 // pred_fallthru
          _
      $region64: #{tpu_custom_call.1} parent=5 // pred_fallthru
        _
    $region6: #{tpu_custom_call.1} parent=1 // loop_footer
      %s25 = sadd.s32 1, %s21
    $region7: #{tpu_custom_call.1} parent=1 // loop_footer_branch
      %20 = sbr.rel target = $region3
    $region8: #{tpu_custom_call.1} parent=1 // loop_exit
      _
    %579 = vsyncpa [#allocation4], 1
    %s580 = scalar_lea.sflag [#allocation4], 1
    %581 = vsyncpa %s580, 1
    %582 = vsyncpa [#allocation7], 1
    %s583 = scalar_lea.sflag [#allocation7], 1
    %584 = vsyncpa %s583, 1
    %585 = vsyncpa [#allocation5], 1
    %s586 = scalar_lea.sflag [#allocation5], 1
    %587 = vsyncpa %s586, 1

</llo_original>
